<compile_context>
chip_gen: v7x
topology: tpu7x:2x2x1
jax: 0.10.0
libtpu: 0.0.40
codegen_flags: <defaults>
</compile_context>

<pallas_src>
import jax
import jax.numpy as jnp
from jax.experimental import pallas as pl
from jax.experimental.pallas import tpu as pltpu

C_IN, C_OUT, KH, KW = 4, 1, 2, 2
_LANES = 128


def _bias_add_kernel(b_ref, x_ref, o_ref):
    # b_ref: SMEM (1,)           -- conv bias (== conv2(zeros) everywhere)
    # x_ref: VMEM (rows, 128)    -- lane-dense slab of x1.squeeze(0)
    # o_ref: VMEM (rows, 128)    -- aliased onto x's HBM buffer
    o_ref[...] = x_ref[...] + b_ref[0]


def model_forward(x1, conv_w, conv_b):
    N, C, H, W = x1.shape
    assert N == 1 and C == C_IN
    del conv_w  # dead: conv2's input is all zeros, so conv2(zeros) == bias.

    # v1 = transpose(x1,2,3); v11 = v1 + 0; v13 = transpose back  ==>  x1.
    v15 = x1[0]                                   # (C, H, W) == squeeze(0)

    # Lane-dense slab: flatten and zero-pad to a multiple of 128 lanes so the
    # store path is always unmasked.  4*16*16 = 1024 hits the zero-padding
    # happy path -> exactly one (8,128) vreg: one vld + one vadd + one vst.
    total = C * H * W
    pad = (-total) % _LANES
    x_flat = v15.reshape(total)
    if pad:
        x_flat = jnp.concatenate([x_flat, jnp.zeros((pad,), x_flat.dtype)])
    x_slab = x_flat.reshape((total + pad) // _LANES, _LANES)

    b_flat = conv_b.reshape(-1).astype(x_slab.dtype)       # (1,)

    out_slab = pl.pallas_call(
        _bias_add_kernel,
        out_shape=jax.ShapeDtypeStruct(x_slab.shape, x_slab.dtype),
        in_specs=[
            pl.BlockSpec(memory_space=pltpu.MemorySpace.SMEM),   # bias scalar
            pl.BlockSpec(memory_space=pltpu.MemorySpace.VMEM),   # x slab
        ],
        out_specs=pl.BlockSpec(memory_space=pltpu.MemorySpace.VMEM),
        input_output_aliases={1: 0},   # write in place, no second HBM buffer
    )(b_flat, x_slab)

    if pad:
        return out_slab.reshape(-1)[:total].reshape(C, H, W)
    return out_slab.reshape(C, H, W)                       # v16: (C, H, W)


if __name__ == "__main__":
    key = jax.random.PRNGKey(0)
    kx, kw, kb, kx2 = jax.random.split(key, 4)

    # Deterministic Conv2d(4, 1, 2) init (PyTorch-style uniform bound).
    bound = 1.0 / (C_IN * KH * KW) ** 0.5
    conv_w = jax.random.uniform(kw, (C_OUT, C_IN, KH, KW), jnp.float32, -bound, bound)
    conv_b = jax.random.uniform(kb, (C_OUT,), jnp.float32, -bound, bound)

    fwd = jax.jit(model_forward)

    # Case 1: 16x16 (total = 1024 -> lane-dense one-vreg happy path, no pad).
    H = W = 16
    x1 = jax.random.normal(kx, (1, C_IN, H, W), dtype=jnp.float32)
    out = jax.block_until_ready(fwd(x1, conv_w, conv_b))

    # Pure-JAX reference of the repaired semantics: conv over zeros == bias
    # broadcast, then add.  (Also proves the constant-fold is exact.)
    conv_ref = jax.lax.conv_general_dilated(
        jnp.zeros((1, C_IN, H + 1, W + 1), jnp.float32), conv_w,
        window_strides=(1, 1), padding="VALID",
        dimension_numbers=("NCHW", "OIHW", "NCHW"),
    ) + conv_b[None, :, None, None]
    ref = x1[0] + conv_ref[0]                              # (4,H,W) + (1,H,W)
    assert out.shape == (C_IN, H, W), out.shape
    assert jnp.allclose(out, ref, atol=1e-6), float(jnp.max(jnp.abs(out - ref)))

    # Case 2: original module's 10x10 (total = 400 -> padded lane-dense path).
    H2 = W2 = 10
    x1b = jax.random.normal(kx2, (1, C_IN, H2, W2), dtype=jnp.float32)
    out2 = jax.block_until_ready(fwd(x1b, conv_w, conv_b))
    ref2 = x1b[0] + conv_b[0]
    assert out2.shape == (C_IN, H2, W2), out2.shape
    assert jnp.allclose(out2, ref2, atol=1e-6), float(jnp.max(jnp.abs(out2 - ref2)))

    print("KERNEL_OK")
</pallas_src>

<mosaic_0001>
module attributes {stable_mosaic.version = 11 : i64} {
  func.func @_bias_add_kernel(%arg0: memref<1xf32, #tpu.memory_space<smem>>, %arg1: memref<8x128xf32, #tpu.memory_space<vmem>>, %arg2: memref<8x128xf32, #tpu.memory_space<vmem>>) attributes {dimension_semantics = [], scalar_prefetch = 0 : i64, scratch_operands = 0 : i64, tpu.core_type = #tpu.core_type<tc>} {
    %c0 = arith.constant 0 : index
    %c0_0 = arith.constant 0 : index
    %0 = vector.load %arg1[%c0, %c0_0] : memref<8x128xf32, #tpu.memory_space<vmem>>, vector<8x128xf32>
    %c0_1 = arith.constant 0 : index
    %1 = memref.load %arg0[%c0_1] : memref<1xf32, #tpu.memory_space<smem>>
    %2 = vector.broadcast %1 : f32 to vector<8x128xf32>
    %3 = arith.addf %0, %2 : vector<8x128xf32>
    %c0_2 = arith.constant 0 : index
    %c0_3 = arith.constant 0 : index
    %4 = vector.load %arg2[%c0_2, %c0_3] : memref<8x128xf32, #tpu.memory_space<vmem>>, vector<8x128xf32>
    tpu.vector_store %arg2[%c0_2, %c0_3], %3 {strides = array<i32>} : memref<8x128xf32, #tpu.memory_space<vmem>>, vector<8x128xf32>,
    return
  }
}

</mosaic_0001>

<llo_original>
// kernel: squeeze.1
$region0: #{squeeze.1}
  %s0 = inlined_call_operand.hbm [shape: f32[1,4,16,16], index: 0, kind: input, shape index: {}]
  %s1 = inlined_call_operand.vmem [shape: f32[8,128], index: 1, kind: output, shape index: {}]
  $region1: #{squeeze.1} parent=0
    #allocation0 [shape = 'u8[32768]{0}', space=vmem, size = 0x8000, scoped, tag = 'operand span for operand 0']
    #allocation1 [shape = 's32[1]{0}', space=sflag, size = 0x4, scoped, tag = 'scoped memory for squeeze.1']
    %2 = vsyncpa [#allocation1], 0
    %s4 = ssub.s32 1024, 1024
    %5 = vsyncadd [#allocation1], %s4
    %s7 = sshll.u32 [#allocation0], 4
    %s8 = int_to_ptr.vmem [resolvable:$true] %s7
    %10 = dma.hbm_to_vmem [thread:$0]  %s0, 1024, %s8, [#allocation1]
    %11 = dma.done [#allocation1], 1024
    %v12 = vld [vmem:[#allocation0] ss:$8 sm:$0xf]
    %v13 = vld [vmem:[#allocation0] ss:$8 sm:$0xf0]
    %vm14 = vcmask 1047556
    %v15 = vsel %vm14, %v13, %v12
    %vm16 = vcmask 130048
    %17 = vst.msk [vmem:[%s1] sm:$0xff] %vm16, %v15
    %s18 = scalar_lea.vmem [#allocation0], 7
    %v19 = vld [vmem:[%s18] ss:$8 sm:$0xf]
    %s20 = scalar_lea.vmem [#allocation0], 7
    %v21 = vld [vmem:[%s20] ss:$8 sm:$0xf0]
    %vm22 = vcmask 1047556
    %v23 = vsel %vm22, %v21, %v19
    %24 = vrot.lane.b32.xlu0 %v23, 112
    %v25 = vpop.permute.xlu0 %24
    %vm26 = vcmask 1048448
    %27 = vst.msk [vmem:[%s1] sm:$0xff] %vm26, %v25
    %s28 = scalar_lea.vmem [#allocation0], 6
    %v29 = vld [vmem:[%s28] ss:$8 sm:$0xf]
    %s30 = scalar_lea.vmem [#allocation0], 6
    %v31 = vld [vmem:[%s30] ss:$8 sm:$0xf0]
    %vm32 = vcmask 1047556
    %v33 = vsel %vm32, %v31, %v29
    %34 = vrot.lane.b32.xlu0 %v33, 96
    %v35 = vpop.permute.xlu0 %34
    %vm36 = vcmask 917248
    %37 = vst.msk [vmem:[%s1] sm:$0xff] %vm36, %v35
    %s38 = scalar_lea.vmem [#allocation0], 5
    %v39 = vld [vmem:[%s38] ss:$8 sm:$0xf]
    %s40 = scalar_lea.vmem [#allocation0], 5
    %v41 = vld [vmem:[%s40] ss:$8 sm:$0xf0]
    %vm42 = vcmask 1047556
    %v43 = vsel %vm42, %v41, %v39
    %44 = vrot.lane.b32.xlu0 %v43, 80
    %v45 = vpop.permute.xlu0 %44
    %vm46 = vcmask 786048
    %47 = vst.msk [vmem:[%s1] sm:$0xff] %vm46, %v45
    %s48 = scalar_lea.vmem [#allocation0], 4
    %v49 = vld [vmem:[%s48] ss:$8 sm:$0xf]
    %s50 = scalar_lea.vmem [#allocation0], 4
    %v51 = vld [vmem:[%s50] ss:$8 sm:$0xf0]
    %vm52 = vcmask 1047556
    %v53 = vsel %vm52, %v51, %v49
    %54 = vrot.lane.b32.xlu0 %v53, 64
    %v55 = vpop.permute.xlu0 %54
    %vm56 = vcmask 654848
    %57 = vst.msk [vmem:[%s1] sm:$0xff] %vm56, %v55
    %s58 = scalar_lea.vmem [#allocation0], 3
    %v59 = vld [vmem:[%s58] ss:$8 sm:$0xf]
    %s60 = scalar_lea.vmem [#allocation0], 3
    %v61 = vld [vmem:[%s60] ss:$8 sm:$0xf0]
    %vm62 = vcmask 1047556
    %v63 = vsel %vm62, %v61, %v59
    %64 = vrot.lane.b32.xlu0 %v63, 48
    %v65 = vpop.permute.xlu0 %64
    %vm66 = vcmask 523648
    %67 = vst.msk [vmem:[%s1] sm:$0xff] %vm66, %v65
    %s68 = scalar_lea.vmem [#allocation0], 2
    %v69 = vld [vmem:[%s68] ss:$8 sm:$0xf]
    %s70 = scalar_lea.vmem [#allocation0], 2
    %v71 = vld [vmem:[%s70] ss:$8 sm:$0xf0]
    %vm72 = vcmask 1047556
    %v73 = vsel %vm72, %v71, %v69
    %74 = vrot.lane.b32.xlu0 %v73, 32
    %v75 = vpop.permute.xlu0 %74
    %vm76 = vcmask 392448
    %77 = vst.msk [vmem:[%s1] sm:$0xff] %vm76, %v75
    %s78 = scalar_lea.vmem [#allocation0], 1
    %v79 = vld [vmem:[%s78] ss:$8 sm:$0xf]
    %s80 = scalar_lea.vmem [#allocation0], 1
    %v81 = vld [vmem:[%s80] ss:$8 sm:$0xf0]
    %vm82 = vcmask 1047556
    %v83 = vsel %vm82, %v81, %v79
    %84 = vrot.lane.b32.xlu0 %v83, 16
    %v85 = vpop.permute.xlu0 %84
    %vm86 = vcmask 261248
    %87 = vst.msk [vmem:[%s1] sm:$0xff] %vm86, %v85
    %88 = vsyncpa [#allocation1], 1

// kernel: model_forward.1
$region0: #{model_forward.1}
  #allocation0 [shape = 'u32[]', space=smem, size = 0x4, offset = 0x4, fixed_abs, tag = 'smem constant byte address 0x4 - core index']
  #allocation1 [shape = 'u32[144,128]{1,0:T(1,128)}', space=vmem, size = 0x12000, scoped, tag = 'internal scratch']
  #allocation2 [shape = 'f32[1]{0:T(128)S(6)}', space=smem, size = 0x200, scoped, tag = 'scoped memory for model_forward.1']
  %s0 = inlined_call_operand.<no memory space> [shape: f32[1], index: 0, kind: input, shape index: {}]
  %s1 = inlined_call_operand.vmem [shape: f32[8,128], index: 1, kind: input, shape index: {}, may-alias: {1,2}]
  %s2 = inlined_call_operand.vmem [shape: f32[8,128], index: 2, kind: output, shape index: {}, may-alias: {1,2}]
  %s3 = sld [smem:[#allocation0]]
  $region18: #{model_forward.1} parent=0
    _
  %s5 = ssub.s32 1, %s3
  %s6 = scalar_select 0, %s5, %s3
  %7 = sst [smem:[#allocation2]] %s0
  // Predicated region
  $region2: #{model_forward.1} parent=0 // pred_check
    _
  $region3: #{model_forward.1} parent=0 // pred_check_branch
    %9 = sbr.rel (0) target = $region5
  $region4: #{model_forward.1} parent=0 // pred_region
    _
  $region5: #{model_forward.1} parent=0 // pred_fallthru
    _
  // Predicated region
  $region6: #{model_forward.1} parent=0 // pred_check
    _
  $region7: #{model_forward.1} parent=0 // pred_check_branch
    %11 = sbr.rel (0) target = $region9
  $region8: #{model_forward.1} parent=0 // pred_region
    _
  $region9: #{model_forward.1} parent=0 // pred_fallthru
    _
  %v12 = vld [vmem:[%s1] sm:$0xff]
  %s13 = sld [smem:[#allocation2]]
  %v14 = vstv %s13
  %v15 = vadd.f32 %v12, %v14
  %16 = vst [vmem:[%s2] sm:$0xff] %v15
  // Predicated region
  $region10: #{model_forward.1} parent=0 // pred_check
    _
  $region11: #{model_forward.1} parent=0 // pred_check_branch
    %18 = sbr.rel (0) target = $region13
  $region12: #{model_forward.1} parent=0 // pred_region
    _
  $region13: #{model_forward.1} parent=0 // pred_fallthru
    _
  // Predicated region
  $region14: #{model_forward.1} parent=0 // pred_check
    _
  $region15: #{model_forward.1} parent=0 // pred_check_branch
    %20 = sbr.rel (0) target = $region17
  $region16: #{model_forward.1} parent=0 // pred_region
    _
  $region17: #{model_forward.1} parent=0 // pred_fallthru
    _

</llo_original>
